<compile_context>
chip_gen: v7x
topology: tpu7x:2x2x1
jax: 0.10.0
libtpu: 0.0.40
codegen_flags: <defaults>
</compile_context>

<pallas_src>
import numpy as np
import jax
import jax.numpy as jnp
from jax.experimental import pallas as pl
from jax.experimental.pallas import tpu as pltpu

SAMPLING_RATE = 16000

# ---------------- problem sizes (small, forward-consistent) -----------------
B = 2          # batch
T_WAV = 256    # raw waveform samples
DS = 4         # upstream downsample rate (frame size == stride)
H = 32         # hidden size
L = 2          # number of returned hidden-state layers
TARGET_SR = 8000                     # target_sample_rate
ORIG_SR = SAMPLING_RATE // DS        # 16000 // ds_rate = frame rate of upstream
SCALE = TARGET_SR / ORIG_SR          # F.interpolate scale_factor
T_IN = T_WAV // DS                   # upstream frames per utterance (64)
T_OUT = int(np.floor(T_IN * SCALE))  # F.interpolate output length (128)

COMPUTE_DTYPE = jnp.bfloat16         # MXU operand dtype for the layer matmuls

# Kernel below is written with explicit output refs (safest traced signature);
# it is specialized to L returned layers.
assert L == 2, "fused_kernel is written for L == 2 returned layers"


# ------------------------ fused upstream + resampler -------------------------
def fused_kernel(frames_ref, w0_ref, wrest_ref, b_ref, m_ref, out0_ref, out1_ref):
    """One batch element per grid step; each layer is resampled as soon as it
    is computed and written straight into its own output (final layout).

    frames_ref: [T_IN, DS]    bf16  (one utterance, waveform framed)
    w0_ref:     [DS, H]       bf16  (= w_feat @ w_layers[0], pre-fused)
    wrest_ref:  [L-1, H, H]   bf16  (remaining layer weights)
    b_ref:      [L, 1, H]     f32   (layer biases)
    m_ref:      [T_OUT, T_IN] f32   (linear-interp matrix over time; f32 kept —
                                     MXU idle at these shapes, better numerics)
    out*_ref:   [1, T_OUT, H] f32   (block of the per-layer [B, T_OUT, H] output)
    """
    out_refs = (out0_ref, out1_ref)          # one ref per returned layer
    m = m_ref[...]                           # hoisted; reused by every layer

    # layer 0 (feature extraction folded into the first linear), f32 accumulate
    x = jnp.dot(frames_ref[...], w0_ref[...],
                preferred_element_type=jnp.float32)          # [T_IN, H] f32
    x = jnp.tanh(x + b_ref[0])               # bias + tanh in f32 (v5e-safe)
    out_refs[0][0] = jnp.dot(m, x, preferred_element_type=jnp.float32)

    for l in range(1, L):                    # static tiny loop; one layer live
        x = jnp.dot(x.astype(COMPUTE_DTYPE), wrest_ref[l - 1],
                    preferred_element_type=jnp.float32)
        x = jnp.tanh(x + b_ref[l])
        out_refs[l][0] = jnp.dot(m, x, preferred_element_type=jnp.float32)
    # TODO(synk): at real S3PRL sizes (T_IN in the thousands) the dense
    # [T_OUT, T_IN] matrix should become a 2-tap gather+lerp (or a tiled
    # grid over T_OUT/T_IN blocks) instead of a dense MXU dot.


# advisory cost hint for the XLA scheduler
_FLOPS = B * (2 * T_IN * DS * H
              + (L - 1) * 2 * T_IN * H * H
              + L * 2 * T_OUT * T_IN * H)
_TRANSCENDENTALS = B * L * T_IN * H
_BYTES = (B * T_IN * DS * 2 + DS * H * 2 + (L - 1) * H * H * 2
          + L * H * 4 + T_OUT * T_IN * 4 + L * B * T_OUT * H * 4)


def run_fused(frames, w0_fused, w_rest, b_layers, interp_mat):
    out_spec = pl.BlockSpec((1, T_OUT, H), lambda b: (b, 0, 0))
    return pl.pallas_call(
        fused_kernel,
        grid=(B,),
        in_specs=[
            pl.BlockSpec((T_IN, DS), lambda b: (b, 0)),        # per-utterance frames
            pl.BlockSpec((DS, H), lambda b: (0, 0)),           # fused layer-0 weight
            pl.BlockSpec((L - 1, H, H), lambda b: (0, 0, 0)),  # remaining weights
            pl.BlockSpec((L, 1, H), lambda b: (0, 0, 0)),      # biases
            pl.BlockSpec((T_OUT, T_IN), lambda b: (0, 0)),     # interp matrix (f32)
        ],
        out_specs=tuple(out_spec for _ in range(L)),
        out_shape=tuple(jax.ShapeDtypeStruct((B, T_OUT, H), jnp.float32)
                        for _ in range(L)),
        compiler_params=pltpu.CompilerParams(
            dimension_semantics=("parallel",)),                # v7x: 2 TCs split B
        cost_estimate=pl.CostEstimate(flops=_FLOPS,
                                      transcendentals=_TRANSCENDENTALS,
                                      bytes_accessed=_BYTES),
    )(frames, w0_fused, w_rest, b_layers, interp_mat)


# ------------------------------ glue (plain JAX) -----------------------------
def linear_interp_matrix(t_in, t_out, scale):
    """F.interpolate(mode='linear', align_corners=False) as a dense matrix."""
    mat = np.zeros((t_out, t_in), dtype=np.float32)
    for j in range(t_out):
        src = (j + 0.5) / scale - 0.5
        src = max(src, 0.0)
        i0 = min(int(np.floor(src)), t_in - 1)
        i1 = min(i0 + 1, t_in - 1)
        w1 = src - i0
        mat[j, i0] += 1.0 - w1
        mat[j, i1] += w1
    return jnp.asarray(mat)


def prepare_params(params):
    """One-time parameter prep, hoisted OUT of the per-call forward path."""
    return {
        # fold feature-extraction weight into layer-0 weight (no nonlinearity between)
        "w0_fused": (params["w_feat"] @ params["w_layers"][0]).astype(COMPUTE_DTYPE),
        "w_rest": params["w_layers"][1:].astype(COMPUTE_DTYPE),     # [L-1, H, H]
        "b_layers": params["b_layers"].astype(jnp.float32),          # [L, 1, H]
        "interp_mat": params["interp_mat"].astype(jnp.float32),      # f32 on purpose
    }


@jax.jit
def s3prl_wrapper_forward(wav, wav_lens, phn, phn_lens, prepared):
    """Mirrors S3PRLWrapper.forward(wav, wav_lens, phn, phn_lens) -> list[pred]."""
    # TODO(synk): wav_lens-based padding masks of the real S3PRL upstream are not
    # reproduced for the synthetic stand-in; phn / phn_lens are unused in the
    # reference forward as well.
    # TODO(synk): torchaudio 'sinc'/'kaiser' resampling modes are not implemented;
    # the F.interpolate(mode='linear') path is used.
    del wav_lens, phn, phn_lens

    # "conv1d with kernel==stride==DS" framing; B folded into rows (grid splits it back).
    frames = wav.reshape(B * T_IN, DS).astype(COMPUTE_DTYPE)
    outs = run_fused(frames, prepared["w0_fused"], prepared["w_rest"],
                     prepared["b_layers"], prepared["interp_mat"])
    return list(outs)   # already [B, T_OUT, H] per layer — no post-kernel layout op


def reference_forward(wav, params):
    """Pure-JAX reference of the same synthetic forward (f32)."""
    frames = wav.reshape(B, T_IN, DS)
    x = jnp.einsum("btd,dh->bth", frames, params["w_feat"])
    outs = []
    for l in range(L):
        x = jnp.tanh(jnp.einsum("bth,hk->btk", x, params["w_layers"][l])
                     + params["b_layers"][l])
        outs.append(jnp.einsum("ot,bth->boh", params["interp_mat"], x))
    return outs


def make_params(key):
    k1, k2, k3 = jax.random.split(key, 3)
    return {
        "w_feat": jax.random.normal(k1, (DS, H), jnp.float32) * 0.1,
        "w_layers": jax.random.normal(k2, (L, H, H), jnp.float32) * 0.1,
        # shape [L, 1, H] so each bias broadcasts over the time axis directly
        "b_layers": jax.random.normal(k3, (L, 1, H), jnp.float32) * 0.1,
        "interp_mat": linear_interp_matrix(T_IN, T_OUT, SCALE),
    }


if __name__ == "__main__":
    key = jax.random.PRNGKey(0)
    kw, kp, kparams = jax.random.split(key, 3)

    wav = jax.random.normal(kw, (B, T_WAV), jnp.float32)
    wav_lens = jnp.array([T_WAV, T_WAV], dtype=jnp.int32)
    phn = jax.random.randint(kp, (B, 8), 0, 40, dtype=jnp.int32)
    phn_lens = jnp.array([8, 8], dtype=jnp.int32)

    params = make_params(kparams)
    prepared = prepare_params(params)   # one-time fold + casts (not in forward path)

    preds = s3prl_wrapper_forward(wav, wav_lens, phn, phn_lens, prepared)
    preds = [jax.block_until_ready(p) for p in preds]
    refs = reference_forward(wav, params)

    assert len(preds) == L
    for p, r in zip(preds, refs):
        assert p.shape == (B, T_OUT, H), p.shape
        assert p.dtype == jnp.float32
        assert bool(jnp.all(jnp.isfinite(p)))
        # tolerance covers bf16 layer-matmul operands (f32 accumulation; interp in f32)
        assert bool(jnp.allclose(p, r, atol=5e-2, rtol=5e-2))

    print("KERNEL_OK")
</pallas_src>

<mosaic_0001>
module attributes {stable_mosaic.version = 11 : i64} {
  func.func @fused_kernel(%arg0: i32, %arg1: memref<64x4xbf16, #tpu.memory_space<vmem>>, %arg2: memref<4x32xbf16, #tpu.memory_space<vmem>>, %arg3: memref<1x32x32xbf16, #tpu.memory_space<vmem>>, %arg4: memref<2x1x32xf32, #tpu.memory_space<vmem>>, %arg5: memref<128x64xf32, #tpu.memory_space<vmem>>, %arg6: memref<1x128x32xf32, #tpu.memory_space<vmem>>, %arg7: memref<1x128x32xf32, #tpu.memory_space<vmem>>) attributes {dimension_semantics = [#tpu.dimension_semantics<parallel>], iteration_bounds = array<i64: 2>, scalar_prefetch = 0 : i64, scratch_operands = 0 : i64, tpu.core_type = #tpu.core_type<tc>, window_params = [{transform_indices = @transform_0, window_bounds = array<i64: 64, 4>}, {pipeline_mode = #tpu.pipeline_mode<synchronous>, transform_indices = @transform_1, window_bounds = array<i64: 4, 32>}, {pipeline_mode = #tpu.pipeline_mode<synchronous>, transform_indices = @transform_2, window_bounds = array<i64: 1, 32, 32>}, {pipeline_mode = #tpu.pipeline_mode<synchronous>, transform_indices = @transform_3, window_bounds = array<i64: 2, 1, 32>}, {pipeline_mode = #tpu.pipeline_mode<synchronous>, transform_indices = @transform_4, window_bounds = array<i64: 128, 64>}, {transform_indices = @transform_5, window_bounds = array<i64: 1, 128, 32>}, {transform_indices = @transform_6, window_bounds = array<i64: 1, 128, 32>}]} {
    %c0 = arith.constant 0 : index
    %c0_0 = arith.constant 0 : index
    %0 = vector.load %arg5[%c0, %c0_0] : memref<128x64xf32, #tpu.memory_space<vmem>>, vector<128x64xf32>
    %c0_1 = arith.constant 0 : index
    %c0_2 = arith.constant 0 : index
    %1 = vector.load %arg1[%c0_1, %c0_2] : memref<64x4xbf16, #tpu.memory_space<vmem>>, vector<64x4xbf16>
    %c0_3 = arith.constant 0 : index
    %c0_4 = arith.constant 0 : index
    %2 = vector.load %arg2[%c0_3, %c0_4] : memref<4x32xbf16, #tpu.memory_space<vmem>>, vector<4x32xbf16>
    %cst = arith.constant dense<0.000000e+00> : vector<64x32xf32>
    %3 = tpu.matmul %1, %2, %cst {dimension_numbers = #tpu.dot_dimension_numbers<[1], [0], [0], [1], [0, 0, 1, 1], [], []>} : vector<64x4xbf16>, vector<4x32xbf16>, vector<64x32xf32> -> vector<64x32xf32>
    %c0_5 = arith.constant 0 : index
    %c0_6 = arith.constant 0 : index
    %c0_7 = arith.constant 0 : index
    %4 = vector.load %arg4[%c0_5, %c0_6, %c0_7] : memref<2x1x32xf32, #tpu.memory_space<vmem>>, vector<1x1x32xf32>
    %5 = vector.shape_cast %4 : vector<1x1x32xf32> to vector<1x32xf32>
    %6 = vector.broadcast %5 : vector<1x32xf32> to vector<64x32xf32>
    %7 = arith.addf %3, %6 : vector<64x32xf32>
    %8 = math.tanh %7 : vector<64x32xf32>
    %cst_8 = arith.constant dense<0.000000e+00> : vector<128x32xf32>
    %9 = tpu.matmul %0, %8, %cst_8 {dimension_numbers = #tpu.dot_dimension_numbers<[1], [0], [0], [1], [0, 0, 1, 1], [], []>} : vector<128x64xf32>, vector<64x32xf32>, vector<128x32xf32> -> vector<128x32xf32>
    %c0_9 = arith.constant 0 : index
    %c0_10 = arith.constant 0 : index
    %c0_11 = arith.constant 0 : index
    %10 = vector.load %arg6[%c0_9, %c0_10, %c0_11] : memref<1x128x32xf32, #tpu.memory_space<vmem>>, vector<1x128x32xf32>
    %11 = vector.shape_cast %10 : vector<1x128x32xf32> to vector<128x32xf32>
    %12 = vector.shape_cast %9 : vector<128x32xf32> to vector<1x128x32xf32>
    tpu.vector_store %arg6[%c0_9, %c0_10, %c0_11], %12 {strides = array<i32>} : memref<1x128x32xf32, #tpu.memory_space<vmem>>, vector<1x128x32xf32>,
    %13 = arith.truncf %8 : vector<64x32xf32> to vector<64x32xbf16>
    %c0_12 = arith.constant 0 : index
    %c0_13 = arith.constant 0 : index
    %c0_14 = arith.constant 0 : index
    %14 = vector.load %arg3[%c0_12, %c0_13, %c0_14] : memref<1x32x32xbf16, #tpu.memory_space<vmem>>, vector<1x32x32xbf16>
    %15 = vector.shape_cast %14 : vector<1x32x32xbf16> to vector<32x32xbf16>
    %cst_15 = arith.constant dense<0.000000e+00> : vector<64x32xf32>
    %16 = tpu.matmul %13, %15, %cst_15 {dimension_numbers = #tpu.dot_dimension_numbers<[1], [0], [0], [1], [0, 0, 1, 1], [], []>} : vector<64x32xbf16>, vector<32x32xbf16>, vector<64x32xf32> -> vector<64x32xf32>
    %c1 = arith.constant 1 : index
    %c0_16 = arith.constant 0 : index
    %c0_17 = arith.constant 0 : index
    %17 = vector.load %arg4[%c1, %c0_16, %c0_17] : memref<2x1x32xf32, #tpu.memory_space<vmem>>, vector<1x1x32xf32>
    %18 = vector.shape_cast %17 : vector<1x1x32xf32> to vector<1x32xf32>
    %19 = vector.broadcast %18 : vector<1x32xf32> to vector<64x32xf32>
    %20 = arith.addf %16, %19 : vector<64x32xf32>
    %21 = math.tanh %20 : vector<64x32xf32>
    %cst_18 = arith.constant dense<0.000000e+00> : vector<128x32xf32>
    %22 = tpu.matmul %0, %21, %cst_18 {dimension_numbers = #tpu.dot_dimension_numbers<[1], [0], [0], [1], [0, 0, 1, 1], [], []>} : vector<128x64xf32>, vector<64x32xf32>, vector<128x32xf32> -> vector<128x32xf32>
    %c0_19 = arith.constant 0 : index
    %c0_20 = arith.constant 0 : index
    %c0_21 = arith.constant 0 : index
    %23 = vector.load %arg7[%c0_19, %c0_20, %c0_21] : memref<1x128x32xf32, #tpu.memory_space<vmem>>, vector<1x128x32xf32>
    %24 = vector.shape_cast %23 : vector<1x128x32xf32> to vector<128x32xf32>
    %25 = vector.shape_cast %22 : vector<128x32xf32> to vector<1x128x32xf32>
    tpu.vector_store %arg7[%c0_19, %c0_20, %c0_21], %25 {strides = array<i32>} : memref<1x128x32xf32, #tpu.memory_space<vmem>>, vector<1x128x32xf32>,
    return
  }
  func.func @transform_0(%arg0: i32) -> (i32, i32) {
    %c0_i32 = arith.constant 0 : i32
    %c0_i32_0 = arith.constant 0 : i32
    return %arg0, %c0_i32 : i32, i32
  }
  func.func @transform_1(%arg0: i32) -> (i32, i32) {
    %c0_i32 = arith.constant 0 : i32
    %c0_i32_0 = arith.constant 0 : i32
    %c0_i32_1 = arith.constant 0 : i32
    return %c0_i32, %c0_i32_0 : i32, i32
  }
  func.func @transform_2(%arg0: i32) -> (i32, i32, i32) {
    %c0_i32 = arith.constant 0 : i32
    %c0_i32_0 = arith.constant 0 : i32
    %c0_i32_1 = arith.constant 0 : i32
    %c0_i32_2 = arith.constant 0 : i32
    return %c0_i32, %c0_i32_0, %c0_i32_1 : i32, i32, i32
  }
  func.func @transform_3(%arg0: i32) -> (i32, i32, i32) {
    %c0_i32 = arith.constant 0 : i32
    %c0_i32_0 = arith.constant 0 : i32
    %c0_i32_1 = arith.constant 0 : i32
    %c0_i32_2 = arith.constant 0 : i32
    return %c0_i32, %c0_i32_0, %c0_i32_1 : i32, i32, i32
  }
  func.func @transform_4(%arg0: i32) -> (i32, i32) {
    %c0_i32 = arith.constant 0 : i32
    %c0_i32_0 = arith.constant 0 : i32
    %c0_i32_1 = arith.constant 0 : i32
    return %c0_i32, %c0_i32_0 : i32, i32
  }
  func.func @transform_5(%arg0: i32) -> (i32, i32, i32) {
    %c0_i32 = arith.constant 0 : i32
    %c0_i32_0 = arith.constant 0 : i32
    %c0_i32_1 = arith.constant 0 : i32
    return %arg0, %c0_i32, %c0_i32_0 : i32, i32, i32
  }
  func.func @transform_6(%arg0: i32) -> (i32, i32, i32) {
    %c0_i32 = arith.constant 0 : i32
    %c0_i32_0 = arith.constant 0 : i32
    %c0_i32_1 = arith.constant 0 : i32
    return %arg0, %c0_i32, %c0_i32_0 : i32, i32, i32
  }
}

</mosaic_0001>

<llo_original>
// kernel: s3prl_wrapper_forward.1
$region0: #{s3prl_wrapper_forward.1}
  #allocation0 [shape = 'u32[]', space=smem, size = 0x4, offset = 0x4, fixed_abs, tag = 'smem constant byte address 0x4 - core index']
  #allocation1 [shape = 'u32[144,128]{1,0:T(1,128)}', space=vmem, size = 0x12000, scoped, tag = 'internal scratch']
  %s0 = inlined_call_operand.vmem [shape: bf16[128,4], index: 0, kind: input, shape index: {}]
  %s1 = inlined_call_operand.vmem [shape: bf16[4,32], index: 1, kind: input, shape index: {}]
  %s2 = inlined_call_operand.vmem [shape: bf16[1,32,32], index: 2, kind: input, shape index: {}]
  %s3 = inlined_call_operand.vmem [shape: f32[2,1,32], index: 3, kind: input, shape index: {}]
  %s4 = inlined_call_operand.vmem [shape: f32[128,64], index: 4, kind: input, shape index: {}]
  %s5 = inlined_call_operand.vmem [shape: f32[2,128,32], index: 5, kind: output, shape index: {0}]
  %s6 = inlined_call_operand.vmem [shape: f32[2,128,32], index: 6, kind: output, shape index: {1}]
  %7 = xla_tuple %s5, %s6
  %s8 = sld [smem:[#allocation0]]
  $region61: #{s3prl_wrapper_forward.1} parent=0
    _
  %s10 = ssub.s32 1, %s8
  %s11 = scalar_select 0, %s10, %s8
  loop: start=0, step=1, limit=4
  $region2: #{s3prl_wrapper_forward.1} parent=0 // loop_pre_header
    _
  $region3: #{s3prl_wrapper_forward.1} parent=0 // loop_header
    %s13 = sphi 0, %s17
    %p14 = scmp.ge.s32.totalorder %s13, 4
    %s23 = sphi 0, %s25
    %s26 = sphi 0, %s23
    %s27 = sphi 0, %s26
    %s43 = sphi 0, %s27
    %s47 = sphi 0, %s47
    %s49 = sphi 0, %s47
    %s50 = sphi 0, %s49
    %s64 = sphi 0, %s50
    %s68 = sphi 0, %s68
    %s70 = sphi 0, %s68
    %s71 = sphi 0, %s70
    %s85 = sphi 0, %s71
    %s89 = sphi 0, %s89
    %s91 = sphi 0, %s89
    %s92 = sphi 0, %s91
    %s106 = sphi 0, %s92
    %s110 = sphi 0, %s110
    %s112 = sphi 0, %s110
    %s113 = sphi 0, %s112
    %s127 = sphi 0, %s113
    %s133 = sphi 0, %s135
    %s136 = sphi 0, %s133
    %s137 = sphi 0, %s136
    %s153 = sphi 0, %s137
    %s159 = sphi 0, %s161
    %s162 = sphi 0, %s159
    %s163 = sphi 0, %s162
    %s179 = sphi 0, %s163
  $region4: #{s3prl_wrapper_forward.1} parent=0 // loop_header_branch
    %16 = sbr.rel (%p14) target = $region8
  $region5: #{s3prl_wrapper_forward.1} parent=0 // loop_body
    %s18 = ssub.s32 %s13, 1
    %s19 = ssub.s32 %s13, 2
    %s20 = sadd.s32 %s13, 1
    %s21 = ssub.s32 %s13, %s20
    %p22 = scmp.eq.s32.totalorder %s21, 0
    %s24 = sadd.s32 %s23, 1
    %s25 = scalar_select %p22, %s23, %s24
    %p28 = pneg %p22
    %p29 = scmp.eq.s32.totalorder %s13, 1
    %p30 = por %p28, %p29
    %p31 = scmp.ne.s32.totalorder %s23, %s26
    %p32 = scmp.eq.s32.totalorder %s13, 0
    %p33 = por %p31, %p32
    %p34 = scmp.ne.s32.totalorder %s23, %s26
    %p35 = scmp.eq.s32.totalorder %s18, 1
    %p36 = por %p34, %p35
    %p37 = scmp.ne.s32.totalorder %s26, %s27
    %p38 = scmp.eq.s32.totalorder %s18, 0
    %p39 = por %p37, %p38
    %p40 = scmp.ne.s32.totalorder %s26, %s27
    %p41 = scmp.eq.s32.totalorder %s19, 1
    %p42 = por %p40, %p41
    %p44 = scmp.ne.s32.totalorder %s27, %s43
    %p45 = scmp.eq.s32.totalorder %s19, 0
    %p46 = por %p44, %p45
    %s48 = sadd.s32 %s47, 1
    %p51 = scmp.eq.s32.totalorder %s13, 1
    %p52 = scmp.ne.s32.totalorder %s47, %s49
    %p53 = scmp.eq.s32.totalorder %s13, 0
    %p54 = por %p52, %p53
    %p55 = scmp.ne.s32.totalorder %s47, %s49
    %p56 = scmp.eq.s32.totalorder %s18, 1
    %p57 = por %p55, %p56
    %p58 = scmp.ne.s32.totalorder %s49, %s50
    %p59 = scmp.eq.s32.totalorder %s18, 0
    %p60 = por %p58, %p59
    %p61 = scmp.ne.s32.totalorder %s49, %s50
    %p62 = scmp.eq.s32.totalorder %s19, 1
    %p63 = por %p61, %p62
    %p65 = scmp.ne.s32.totalorder %s50, %s64
    %p66 = scmp.eq.s32.totalorder %s19, 0
    %p67 = por %p65, %p66
    %s69 = sadd.s32 %s68, 1
    %p72 = scmp.eq.s32.totalorder %s13, 1
    %p73 = scmp.ne.s32.totalorder %s68, %s70
    %p74 = scmp.eq.s32.totalorder %s13, 0
    %p75 = por %p73, %p74
    %p76 = scmp.ne.s32.totalorder %s68, %s70
    %p77 = scmp.eq.s32.totalorder %s18, 1
    %p78 = por %p76, %p77
    %p79 = scmp.ne.s32.totalorder %s70, %s71
    %p80 = scmp.eq.s32.totalorder %s18, 0
    %p81 = por %p79, %p80
    %p82 = scmp.ne.s32.totalorder %s70, %s71
    %p83 = scmp.eq.s32.totalorder %s19, 1
    %p84 = por %p82, %p83
    %p86 = scmp.ne.s32.totalorder %s71, %s85
    %p87 = scmp.eq.s32.totalorder %s19, 0
    %p88 = por %p86, %p87
    %s90 = sadd.s32 %s89, 1
    %p93 = scmp.eq.s32.totalorder %s13, 1
    %p94 = scmp.ne.s32.totalorder %s89, %s91
    %p95 = scmp.eq.s32.totalorder %s13, 0
    %p96 = por %p94, %p95
    %p97 = scmp.ne.s32.totalorder %s89, %s91
    %p98 = scmp.eq.s32.totalorder %s18, 1
    %p99 = por %p97, %p98
    %p100 = scmp.ne.s32.totalorder %s91, %s92
    %p101 = scmp.eq.s32.totalorder %s18, 0
    %p102 = por %p100, %p101
    %p103 = scmp.ne.s32.totalorder %s91, %s92
    %p104 = scmp.eq.s32.totalorder %s19, 1
    %p105 = por %p103, %p104
    %p107 = scmp.ne.s32.totalorder %s92, %s106
    %p108 = scmp.eq.s32.totalorder %s19, 0
    %p109 = por %p107, %p108
    %s111 = sadd.s32 %s110, 1
    %p114 = scmp.eq.s32.totalorder %s13, 1
    %p115 = scmp.ne.s32.totalorder %s110, %s112
    %p116 = scmp.eq.s32.totalorder %s13, 0
    %p117 = por %p115, %p116
    %p118 = scmp.ne.s32.totalorder %s110, %s112
    %p119 = scmp.eq.s32.totalorder %s18, 1
    %p120 = por %p118, %p119
    %p121 = scmp.ne.s32.totalorder %s112, %s113
    %p122 = scmp.eq.s32.totalorder %s18, 0
    %p123 = por %p121, %p122
    %p124 = scmp.ne.s32.totalorder %s112, %s113
    %p125 = scmp.eq.s32.totalorder %s19, 1
    %p126 = por %p124, %p125
    %p128 = scmp.ne.s32.totalorder %s113, %s127
    %p129 = scmp.eq.s32.totalorder %s19, 0
    %p130 = por %p128, %p129
    %s131 = ssub.s32 %s13, %s20
    %p132 = scmp.eq.s32.totalorder %s131, 0
    %s134 = sadd.s32 %s133, 1
    %s135 = scalar_select %p132, %s133, %s134
    %p138 = pneg %p132
    %p139 = scmp.eq.s32.totalorder %s13, 1
    %p140 = por %p138, %p139
    %p141 = scmp.ne.s32.totalorder %s133, %s136
    %p142 = scmp.eq.s32.totalorder %s13, 0
    %p143 = por %p141, %p142
    %p144 = scmp.ne.s32.totalorder %s133, %s136
    %p145 = scmp.eq.s32.totalorder %s18, 1
    %p146 = por %p144, %p145
    %p147 = scmp.ne.s32.totalorder %s136, %s137
    %p148 = scmp.eq.s32.totalorder %s18, 0
    %p149 = por %p147, %p148
    %p150 = scmp.ne.s32.totalorder %s136, %s137
    %p151 = scmp.eq.s32.totalorder %s19, 1
    %p152 = por %p150, %p151
    %p154 = scmp.ne.s32.totalorder %s137, %s153
    %p155 = scmp.eq.s32.totalorder %s19, 0
    %p156 = por %p154, %p155
    %s157 = ssub.s32 %s13, %s20
    %p158 = scmp.eq.s32.totalorder %s157, 0
    %s160 = sadd.s32 %s159, 1
    %s161 = scalar_select %p158, %s159, %s160
    %p164 = pneg %p158
    %p165 = scmp.eq.s32.totalorder %s13, 1
    %p166 = por %p164, %p165
    %p167 = scmp.ne.s32.totalorder %s159, %s162
    %p168 = scmp.eq.s32.totalorder %s13, 0
    %p169 = por %p167, %p168
    %p170 = scmp.ne.s32.totalorder %s159, %s162
    %p171 = scmp.eq.s32.totalorder %s18, 1
    %p172 = por %p170, %p171
    %p173 = scmp.ne.s32.totalorder %s162, %s163
    %p174 = scmp.eq.s32.totalorder %s18, 0
    %p175 = por %p173, %p174
    %p176 = scmp.ne.s32.totalorder %s162, %s163
    %p177 = scmp.eq.s32.totalorder %s19, 1
    %p178 = por %p176, %p177
    %p180 = scmp.ne.s32.totalorder %s163, %s179
    %p181 = scmp.eq.s32.totalorder %s19, 0
    %p182 = por %p180, %p181
    %p183 = scmp.le.s32.totalorder 1, %s13
    %p184 = scmp.lt.s32.totalorder %s13, 3
    %p185 = pnand %p183, %p184
    %p186 = pneg %p185
    // Predicated region
    $region9: #{s3prl_wrapper_forward.1} parent=5 // pred_check
      _
    $region10: #{s3prl_wrapper_forward.1} parent=5 // pred_check_branch
      %188 = sbr.rel (%p185) target = $region12
    $region11: #{s3prl_wrapper_forward.1} parent=5 // pred_region
      %s189 = ssub.s32 %s13, 1
      // Predicated region
      $region13: #{s3prl_wrapper_forward.1} parent=11 // pred_check
        %p190 = pneg %p60
      $region14: #{s3prl_wrapper_forward.1} parent=11 // pred_check_branch
        %192 = sbr.rel (%p190) target = $region16
      $region15: #{s3prl_wrapper_forward.1} parent=11 // pred_region
        _
      $region16: #{s3prl_wrapper_forward.1} parent=11 // pred_fallthru
        _
      // Predicated region
      $region17: #{s3prl_wrapper_forward.1} parent=11 // pred_check
        %p193 = pneg %p81
      $region18: #{s3prl_wrapper_forward.1} parent=11 // pred_check_branch
        %195 = sbr.rel (%p193) target = $region20
      $region19: #{s3prl_wrapper_forward.1} parent=11 // pred_region
        _
      $region20: #{s3prl_wrapper_forward.1} parent=11 // pred_fallthru
        _
      // Predicated region
      $region21: #{s3prl_wrapper_forward.1} parent=11 // pred_check
        %p196 = pneg %p102
      $region22: #{s3prl_wrapper_forward.1} parent=11 // pred_check_branch
        %198 = sbr.rel (%p196) target = $region24
      $region23: #{s3prl_wrapper_forward.1} parent=11 // pred_region
        _
      $region24: #{s3prl_wrapper_forward.1} parent=11 // pred_fallthru
        _
      // Predicated region
      $region25: #{s3prl_wrapper_forward.1} parent=11 // pred_check
        %p199 = pneg %p123
      $region26: #{s3prl_wrapper_forward.1} parent=11 // pred_check_branch
        %201 = sbr.rel (%p199) target = $region28
      $region27: #{s3prl_wrapper_forward.1} parent=11 // pred_region
        _
      $region28: #{s3prl_wrapper_forward.1} parent=11 // pred_fallthru
        _
    $region12: #{s3prl_wrapper_forward.1} parent=5 // pred_fallthru
      _
    %p202 = scmp.lt.s32.totalorder %s13, 2
    // Predicated region
    $region29: #{s3prl_wrapper_forward.1} parent=5 // pred_check
      %p203 = pneg %p202
    $region30: #{s3prl_wrapper_forward.1} parent=5 // pred_check_branch
      %205 = sbr.rel (%p203) target = $region32
    $region31: #{s3prl_wrapper_forward.1} parent=5 // pred_region
      // Predicated region
      $region33: #{s3prl_wrapper_forward.1} parent=31 // pred_check
        %p206 = pneg %p33
      $region34: #{s3prl_wrapper_forward.1} parent=31 // pred_check_branch
        %208 = sbr.rel (%p206) target = $region36
      $region35: #{s3prl_wrapper_forward.1} parent=31 // pred_region
        %s209 = smul.u32 8, %s13
        %p210 = scmp.lt.s32.totalorder %s209, 15
        %s211 = scalar_select %p210, %s209, 15
        %s212 = smul.addr %s211, 4
        %s213 = scalar_lea.vmem %s0, %s212
        %s214 = smul.u32 8, %s13
      $region36: #{s3prl_wrapper_forward.1} parent=31 // pred_fallthru
        _
    $region32: #{s3prl_wrapper_forward.1} parent=5 // pred_fallthru
      _
    %p215 = scmp.le.s32.totalorder 1, %s13
    %p216 = scmp.lt.s32.totalorder %s13, 3
    %p217 = pnand %p215, %p216
    %p218 = pneg %p217
    // Predicated region
    $region37: #{s3prl_wrapper_forward.1} parent=5 // pred_check
      _
    $region38: #{s3prl_wrapper_forward.1} parent=5 // pred_check_branch
      %220 = sbr.rel (%p217) target = $region40
    $region39: #{s3prl_wrapper_forward.1} parent=5 // pred_region
      %s221 = ssub.s32 %s13, 1
      %s222 = smul.u32 8, %s18
      %p223 = scmp.lt.s32.totalorder %s222, 15
      %s224 = scalar_select %p223, %s222, 15
      %s225 = smul.addr %s224, 4
      %s226 = scalar_lea.vmem %s0, %s225
      %p227 = pneg %p39
      %p228 = pneg %p36
      %p229 = pneg %p60
      %p230 = pneg %p57
      %p231 = pneg %p81
      %p232 = pneg %p78
      %p233 = pneg %p102
      %p234 = pneg %p99
      %p235 = pneg %p123
      %p236 = pneg %p120
      %p237 = pneg %p149
      %p238 = pneg %p146
      %p239 = scmp.lt.s32.totalorder %s18, 1
      %s240 = scalar_select %p239, %s18, 1
      %s241 = smul.addr %s240, 16
      %s242 = smul.addr %s241, 8
      %s243 = scalar_lea.vmem %s5, %s242
      %p244 = pneg %p175
      %p245 = pneg %p172
      %p246 = scmp.lt.s32.totalorder %s18, 1
      %s247 = scalar_select %p246, %s18, 1
      %s248 = smul.addr %s247, 16
      %s249 = smul.addr %s248, 8
      %s250 = scalar_lea.vmem %s6, %s249
      %s251 = smul.u32 8, %s18
      %p252 = scmp.lt.s32.totalorder %s251, 15
      %s253 = scalar_select %p252, %s251, 15
      %s254 = smul.addr %s253, 4
      %s255 = scalar_lea.vmem %s0, %s254
      %s256 = smul.u32 8, %s18
      %p257 = scmp.lt.s32.totalorder %s18, 1
      %s258 = scalar_select %p257, %s18, 1
      %s259 = smul.addr %s258, 16
      %s260 = smul.addr %s259, 8
      %s261 = scalar_lea.vmem %s5, %s260
      %p262 = scmp.lt.s32.totalorder %s18, 1
      %s263 = scalar_select %p262, %s18, 1
      %s264 = smul.addr %s263, 16
      %s265 = smul.addr %s264, 8
      %s266 = scalar_lea.vmem %s6, %s265
      %v268 = vld [vmem:[%s4] sm:$0xff]
      %v269 = vld [vmem:[%s4 + $0x8] sm:$0xff]
      %v270 = vld [vmem:[%s4 + $0x10] sm:$0xff]
      %v271 = vld [vmem:[%s4 + $0x18] sm:$0xff]
      %v272 = vld [vmem:[%s4 + $0x20] sm:$0xff]
      %v273 = vld [vmem:[%s4 + $0x28] sm:$0xff]
      %v274 = vld [vmem:[%s4 + $0x30] sm:$0xff]
      %v275 = vld [vmem:[%s4 + $0x38] sm:$0xff]
      %v276 = vld [vmem:[%s4 + $0x40] sm:$0xff]
      %v277 = vld [vmem:[%s4 + $0x48] sm:$0xff]
      %v278 = vld [vmem:[%s4 + $0x50] sm:$0xff]
      %v279 = vld [vmem:[%s4 + $0x58] sm:$0xff]
      %v280 = vld [vmem:[%s4 + $0x60] sm:$0xff]
      %v281 = vld [vmem:[%s4 + $0x68] sm:$0xff]
      %v282 = vld [vmem:[%s4 + $0x70] sm:$0xff]
      %v283 = vld [vmem:[%s4 + $0x78] sm:$0xff]
      %v284 = vld [vmem:[%s255] sm:$0xf]
      %v285 = vld [vmem:[%s255 + $0x4] sm:$0xf]
      %v286 = vld [vmem:[%s255 + $0x8] sm:$0xf]
      %v287 = vld [vmem:[%s255 + $0xc] sm:$0xf]
      %v288 = vld [vmem:[%s255 + $0x10] sm:$0xf]
      %v289 = vld [vmem:[%s255 + $0x14] sm:$0xf]
      %v290 = vld [vmem:[%s255 + $0x18] sm:$0xf]
      %v291 = vld [vmem:[%s255 + $0x1c] sm:$0xf]
      %v292 = vld [vmem:[%s1] sm:$0x3]
      %v293 = vld [vmem:[%s3] sm:$0x1]
      %v295 = vlaneseq
      %v296 = vshrl.u32 %v295, 7
      %v297 = vsub.s32 0, %v296
      %v298 = vrot.slane %v293, %v297
      %v308 = vunpack.c.l.b16 %v284
      %v309 = vunpack.c.l.b16 %v285
      %v310 = vunpack.c.l.b16 %v286
      %v311 = vunpack.c.l.b16 %v287
      %v312 = vunpack.c.l.b16 %v288
      %v313 = vunpack.c.l.b16 %v289
      %v314 = vunpack.c.l.b16 %v290
      %v315 = vunpack.c.l.b16 %v291
      %v316 = vpack.c.b16 %v309, %v308
      %v317 = vpack.c.b16 %v311, %v310
      %v318 = vpack.c.b16 %v313, %v312
      %v319 = vpack.c.b16 %v315, %v314
      %vm320 = vcmask 31744
      %v322 = vsel %vm320, %v316, 0
      %v325 = vsel %vm320, %v317, 0
      %v328 = vsel %vm320, %v318, 0
      %v331 = vsel %vm320, %v319, 0
      %vm333 = vcmask 1041408
      %v335 = vsel %vm333, %v292, 0
      %337 = vmatprep.subr.bf16.mxu0 0
      %338 = vmatpush1.bf16.msra.mxu0 %v335
      %339 = vmatprep.subr.bf16.mxu0 0
      %340 = vmatpush1.bf16.msra.mxu0 0
      %341 = vmatprep.subr.bf16.mxu0 0
      %342 = vmatpush1.bf16.msra.mxu0 0
      %343 = vmatprep.subr.bf16.mxu0 0
      %344 = vmatpush1.bf16.msra.mxu0 0
      %345 = vmatprep.subr.bf16.mxu0 0
      %346 = vmatpush1.bf16.msra.mxu0 0
      %347 = vmatprep.subr.bf16.mxu0 0
      %348 = vmatpush1.bf16.msra.mxu0 0
      %349 = vmatprep.subr.bf16.mxu0 0
      %350 = vmatpush1.bf16.msra.mxu0 0
      %351 = vmatprep.subr.bf16.mxu0 0
      %352 = vmatpush1.bf16.msra.mxu0 0
      %353 = vmatprep.subr.bf16.mxu0 0
      %354 = vmatpush1.bf16.msra.mxu0 0
      %355 = vmatprep.subr.bf16.mxu0 0
      %356 = vmatpush1.bf16.msra.mxu0 0
      %357 = vmatprep.subr.bf16.mxu0 0
      %358 = vmatpush1.bf16.msra.mxu0 0
      %359 = vmatprep.subr.bf16.mxu0 0
      %360 = vmatpush1.bf16.msra.mxu0 0
      %361 = vmatprep.subr.bf16.mxu0 0
      %362 = vmatpush1.bf16.msra.mxu0 0
      %363 = vmatprep.subr.bf16.mxu0 0
      %364 = vmatpush1.bf16.msra.mxu0 0
      %365 = vmatprep.subr.bf16.mxu0 0
      %366 = vmatpush1.bf16.msra.mxu0 0
      %367 = vmatprep.subr.bf16.mxu0 0
      %368 = vmatpush1.bf16.msra.mxu0 0
      %369 = vmatprep.mubr.bf16.mxu0 0
      %370 = vmatmul.mubr.bf16.gmra.mrb[0].mxu0 %v322
      %v371 = vpop.f32.mrb[0].mxu0
      %v372 = vadd.f32 %v298, %v371
      %v373 = vpop.f32.mrb[0].mxu0
      %v374 = vpop.f32.mrb[0].mxu0
      %v375 = vadd.f32 %v298, %v374
      %v376 = vpop.f32.mrb[0].mxu0
      %377 = vmatprep.mubr.bf16.mxu0 0
      %378 = vmatmul.mubr.bf16.gmra.mrb[0].mxu0 %v325
      %v379 = vpop.f32.mrb[0].mxu0
      %v380 = vadd.f32 %v298, %v379
      %v381 = vpop.f32.mrb[0].mxu0
      %v382 = vpop.f32.mrb[0].mxu0
      %v383 = vadd.f32 %v298, %v382
      %v384 = vpop.f32.mrb[0].mxu0
      %385 = vmatprep.mubr.bf16.mxu0 0
      %386 = vmatmul.mubr.bf16.gmra.mrb[0].mxu0 %v328
      %v387 = vpop.f32.mrb[0].mxu0
      %v388 = vadd.f32 %v298, %v387
      %v389 = vpop.f32.mrb[0].mxu0
      %v390 = vpop.f32.mrb[0].mxu0
      %v391 = vadd.f32 %v298, %v390
      %v392 = vpop.f32.mrb[0].mxu0
      %393 = vmatprep.mubr.bf16.mxu0 0
      %394 = vmatmul.mubr.bf16.gmra.mrb[0].mxu0 %v331
      %v395 = vpop.f32.mrb[0].mxu0
      %v396 = vadd.f32 %v298, %v395
      %v397 = vpop.f32.mrb[0].mxu0
      %v398 = vpop.f32.mrb[0].mxu0
      %v399 = vadd.f32 %v298, %v398
      %v400 = vpop.f32.mrb[0].mxu0
      %401 = vdwg.mxu0
      %v402 = vtanh.pop %v372
      %v403 = vtanh.pop %v375
      %v404 = vtanh.pop %v380
      %v405 = vtanh.pop %v383
      %v406 = vtanh.pop %v388
      %v407 = vtanh.pop %v391
      %v408 = vtanh.pop %v396
      %v409 = vtanh.pop %v399
      %vm410 = vcmask 523264
      %v412 = vsel %vm410, %v268, 0
      %v415 = vsel %vm410, %v269, 0
      %v418 = vsel %vm410, %v270, 0
      %v421 = vsel %vm410, %v271, 0
      %v424 = vsel %vm410, %v272, 0
      %v427 = vsel %vm410, %v273, 0
      %v430 = vsel %vm410, %v274, 0
      %v433 = vsel %vm410, %v275, 0
      %v436 = vsel %vm410, %v276, 0
      %v439 = vsel %vm410, %v277, 0
      %v442 = vsel %vm410, %v278, 0
      %v445 = vsel %vm410, %v279, 0
      %v448 = vsel %vm410, %v280, 0
      %v451 = vsel %vm410, %v281, 0
      %v454 = vsel %vm410, %v282, 0
      %v457 = vsel %vm410, %v283, 0
      %459 = vmatprep.subr.mxu0 0.0
      %460 = vmatpush1.msra.mxu0 %v402
      %461 = vmatprep.subr.mxu0 0.0
      %462 = vmatpush1.msra.mxu0 %v403
      %463 = vmatprep.subr.mxu0 0.0
      %464 = vmatpush1.msra.mxu0 %v404
      %465 = vmatprep.subr.mxu0 0.0
      %466 = vmatpush1.msra.mxu0 %v405
      %467 = vmatprep.subr.mxu0 0.0
      %468 = vmatpush1.msra.mxu0 %v406
      %469 = vmatprep.subr.mxu0 0.0
      %470 = vmatpush1.msra.mxu0 %v407
      %471 = vmatprep.subr.mxu0 0.0
      %472 = vmatpush1.msra.mxu0 %v408
      %473 = vmatprep.subr.mxu0 0.0
      %474 = vmatpush1.msra.mxu0 %v409
      %475 = vmatprep.subr.mxu0 0.0
      %476 = vmatpush1.msra.mxu0 0.0
      %477 = vmatprep.subr.mxu0 0.0
      %478 = vmatpush1.msra.mxu0 0.0
      %479 = vmatprep.subr.mxu0 0.0
      %480 = vmatpush1.msra.mxu0 0.0
      %481 = vmatprep.subr.mxu0 0.0
      %482 = vmatpush1.msra.mxu0 0.0
      %483 = vmatprep.subr.mxu0 0.0
      %484 = vmatpush1.msra.mxu0 0.0
      %485 = vmatprep.subr.mxu0 0.0
      %486 = vmatpush1.msra.mxu0 0.0
      %487 = vmatprep.subr.mxu0 0.0
      %488 = vmatpush1.msra.mxu0 0.0
      %489 = vmatprep.subr.mxu0 0.0
      %490 = vmatpush1.msra.mxu0 0.0
      %491 = vmatprep.subr.mxu0 0.0
      %492 = vmatpush1.msra.mxu0 0.0
      %493 = vmatprep.subr.mxu0 0.0
      %494 = vmatpush1.msra.mxu0 0.0
      %495 = vmatprep.subr.mxu0 0.0
      %496 = vmatpush1.msra.mxu0 0.0
      %497 = vmatprep.subr.mxu0 0.0
      %498 = vmatpush1.msra.mxu0 0.0
      %499 = vmatprep.subr.mxu0 0.0
      %500 = vmatpush1.msra.mxu0 0.0
      %501 = vmatprep.subr.mxu0 0.0
      %502 = vmatpush1.msra.mxu0 0.0
      %503 = vmatprep.subr.mxu0 0.0
      %504 = vmatpush1.msra.mxu0 0.0
      %505 = vmatprep.subr.mxu0 0.0
      %506 = vmatpush1.msra.mxu0 0.0
      %507 = vmatprep.subr.mxu0 0.0
      %508 = vmatpush1.msra.mxu0 0.0
      %509 = vmatprep.subr.mxu0 0.0
      %510 = vmatpush1.msra.mxu0 0.0
      %511 = vmatprep.subr.mxu0 0.0
      %512 = vmatpush1.msra.mxu0 0.0
      %513 = vmatprep.subr.mxu0 0.0
      %514 = vmatpush1.msra.mxu0 0.0
      %515 = vmatprep.subr.mxu0 0.0
      %516 = vmatpush1.msra.mxu0 0.0
      %517 = vmatprep.subr.mxu0 0.0
      %518 = vmatpush1.msra.mxu0 0.0
      %519 = vmatprep.subr.mxu0 0.0
      %520 = vmatpush1.msra.mxu0 0.0
      %521 = vmatprep.subr.mxu0 0.0
      %522 = vmatpush1.msra.mxu0 0.0
      %523 = vmatprep.mubr.f32.mxu0 0.0
      %524 = vmatmul.mubr.f32.gmra.mrb[0].mxu0 %v412
      %v525 = vpop.f32.mrb[0].mxu0
      %v526 = vadd.f32 0.0, %v525
      %v527 = vpop.f32.mrb[0].mxu0
      %528 = vmatprep.mubr.f32.mxu0 0.0
      %529 = vmatmul.mubr.f32.gmra.mrb[0].mxu0 %v415
      %v530 = vpop.f32.mrb[0].mxu0
      %v531 = vadd.f32 0.0, %v530
      %v532 = vpop.f32.mrb[0].mxu0
      %533 = vmatprep.mubr.f32.mxu0 0.0
      %534 = vmatmul.mubr.f32.gmra.mrb[0].mxu0 %v418
      %v535 = vpop.f32.mrb[0].mxu0
      %v536 = vadd.f32 0.0, %v535
      %v537 = vpop.f32.mrb[0].mxu0
      %538 = vmatprep.mubr.f32.mxu0 0.0
      %539 = vmatmul.mubr.f32.gmra.mrb[0].mxu0 %v421
      %v540 = vpop.f32.mrb[0].mxu0
      %v541 = vadd.f32 0.0, %v540
      %v542 = vpop.f32.mrb[0].mxu0
      %543 = vmatprep.mubr.f32.mxu0 0.0
      %544 = vmatmul.mubr.f32.gmra.mrb[0].mxu0 %v424
      %v545 = vpop.f32.mrb[0].mxu0
      %v546 = vadd.f32 0.0, %v545
      %v547 = vpop.f32.mrb[0].mxu0
      %548 = vmatprep.mubr.f32.mxu0 0.0
      %549 = vmatmul.mubr.f32.gmra.mrb[0].mxu0 %v427
      %v550 = vpop.f32.mrb[0].mxu0
      %v551 = vadd.f32 0.0, %v550
      %v552 = vpop.f32.mrb[0].mxu0
      %553 = vmatprep.mubr.f32.mxu0 0.0
      %554 = vmatmul.mubr.f32.gmra.mrb[0].mxu0 %v430
      %v555 = vpop.f32.mrb[0].mxu0
      %v556 = vadd.f32 0.0, %v555
      %v557 = vpop.f32.mrb[0].mxu0
      %558 = vmatprep.mubr.f32.mxu0 0.0
      %559 = vmatmul.mubr.f32.gmra.mrb[0].mxu0 %v433
      %v560 = vpop.f32.mrb[0].mxu0
      %v561 = vadd.f32 0.0, %v560
      %v562 = vpop.f32.mrb[0].mxu0
      %563 = vmatprep.mubr.f32.mxu0 0.0
      %564 = vmatmul.mubr.f32.gmra.mrb[0].mxu0 %v436
      %v565 = vpop.f32.mrb[0].mxu0
      %v566 = vadd.f32 0.0, %v565
      %v567 = vpop.f32.mrb[0].mxu0
      %568 = vmatprep.mubr.f32.mxu0 0.0
      %569 = vmatmul.mubr.f32.gmra.mrb[0].mxu0 %v439
      %v570 = vpop.f32.mrb[0].mxu0
      %v571 = vadd.f32 0.0, %v570
      %v572 = vpop.f32.mrb[0].mxu0
      %573 = vmatprep.mubr.f32.mxu0 0.0
      %574 = vmatmul.mubr.f32.gmra.mrb[0].mxu0 %v442
      %v575 = vpop.f32.mrb[0].mxu0
      %v576 = vadd.f32 0.0, %v575
      %v577 = vpop.f32.mrb[0].mxu0
      %578 = vmatprep.mubr.f32.mxu0 0.0
      %579 = vmatmul.mubr.f32.gmra.mrb[0].mxu0 %v445
      %v580 = vpop.f32.mrb[0].mxu0
      %v581 = vadd.f32 0.0, %v580
      %v582 = vpop.f32.mrb[0].mxu0
      %583 = vmatprep.mubr.f32.mxu0 0.0
      %584 = vmatmul.mubr.f32.gmra.mrb[0].mxu0 %v448
      %v585 = vpop.f32.mrb[0].mxu0
      %v586 = vadd.f32 0.0, %v585
      %v587 = vpop.f32.mrb[0].mxu0
      %588 = vmatprep.mubr.f32.mxu0 0.0
      %589 = vmatmul.mubr.f32.gmra.mrb[0].mxu0 %v451
      %v590 = vpop.f32.mrb[0].mxu0
      %v591 = vadd.f32 0.0, %v590
      %v592 = vpop.f32.mrb[0].mxu0
      %593 = vmatprep.mubr.f32.mxu0 0.0
      %594 = vmatmul.mubr.f32.gmra.mrb[0].mxu0 %v454
      %v595 = vpop.f32.mrb[0].mxu0
      %v596 = vadd.f32 0.0, %v595
      %v597 = vpop.f32.mrb[0].mxu0
      %598 = vmatprep.mubr.f32.mxu0 0.0
      %599 = vmatmul.mubr.f32.gmra.mrb[0].mxu0 %v457
      %v600 = vpop.f32.mrb[0].mxu0
      %v601 = vadd.f32 0.0, %v600
      %v602 = vpop.f32.mrb[0].mxu0
      %603 = vdwg.mxu0
      %vm604 = vcmask 261120
      %605 = vst.msk [vmem:[%s261] sm:$0xff] %vm604, %v526
      %606 = vst.msk [vmem:[%s261 + $0x8] sm:$0xff] %vm604, %v531
      %607 = vst.msk [vmem:[%s261 + $0x10] sm:$0xff] %vm604, %v536
      %608 = vst.msk [vmem:[%s261 + $0x18] sm:$0xff] %vm604, %v541
      %609 = vst.msk [vmem:[%s261 + $0x20] sm:$0xff] %vm604, %v546
      %610 = vst.msk [vmem:[%s261 + $0x28] sm:$0xff] %vm604, %v551
      %611 = vst.msk [vmem:[%s261 + $0x30] sm:$0xff] %vm604, %v556
      %612 = vst.msk [vmem:[%s261 + $0x38] sm:$0xff] %vm604, %v561
      %613 = vst.msk [vmem:[%s261 + $0x40] sm:$0xff] %vm604, %v566
      %614 = vst.msk [vmem:[%s261 + $0x48] sm:$0xff] %vm604, %v571
      %615 = vst.msk [vmem:[%s261 + $0x50] sm:$0xff] %vm604, %v576
      %616 = vst.msk [vmem:[%s261 + $0x58] sm:$0xff] %vm604, %v581
      %617 = vst.msk [vmem:[%s261 + $0x60] sm:$0xff] %vm604, %v586
      %618 = vst.msk [vmem:[%s261 + $0x68] sm:$0xff] %vm604, %v591
      %619 = vst.msk [vmem:[%s261 + $0x70] sm:$0xff] %vm604, %v596
      %620 = vst.msk [vmem:[%s261 + $0x78] sm:$0xff] %vm604, %v601
      %v621 = vpack.c.bf16 %v403, %v402
      %v622 = vpack.c.bf16 %v405, %v404
      %v623 = vpack.c.bf16 %v407, %v406
      %v624 = vpack.c.bf16 %v409, %v408
      %v625 = vld [vmem:[%s2] sm:$0xf]
      %v626 = vld [vmem:[%s2 + $0x4] sm:$0xf]
      %v627 = vld [vmem:[%s2 + $0x8] sm:$0xf]
      %v628 = vld [vmem:[%s2 + $0xc] sm:$0xf]
      %s629 = scalar_lea.vmem %s3, 1
      %v630 = vld [vmem:[%s629] sm:$0x1]
      %v632 = vlaneseq
      %v633 = vshrl.u32 %v632, 7
      %v634 = vsub.s32 0, %v633
      %v635 = vrot.slane %v630, %v634
      %v641 = vunpack.c.l.b16 %v625
      %v642 = vunpack.c.l.b16 %v626
      %v643 = vunpack.c.l.b16 %v627
      %v644 = vunpack.c.l.b16 %v628
      %v645 = vpack.c.b16 %v642, %v641
      %v646 = vpack.c.b16 %v644, %v643
      %v650 = vsel %vm604, %v621, 0
      %v653 = vsel %vm604, %v622, 0
      %v656 = vsel %vm604, %v623, 0
      %v659 = vsel %vm604, %v624, 0
      %661 = vmatprep.subr.bf16.mxu0 0
      %662 = vmatpush1.bf16.msra.mxu0 %v645
      %663 = vmatprep.subr.bf16.mxu0 0
      %664 = vmatpush1.bf16.msra.mxu0 %v646
      %665 = vmatprep.subr.bf16.mxu0 0
      %666 = vmatpush1.bf16.msra.mxu0 0
      %667 = vmatprep.subr.bf16.mxu0 0
      %668 = vmatpush1.bf16.msra.mxu0 0
      %669 = vmatprep.subr.bf16.mxu0 0
      %670 = vmatpush1.bf16.msra.mxu0 0
      %671 = vmatprep.subr.bf16.mxu0 0
      %672 = vmatpush1.bf16.msra.mxu0 0
      %673 = vmatprep.subr.bf16.mxu0 0
      %674 = vmatpush1.bf16.msra.mxu0 0
      %675 = vmatprep.subr.bf16.mxu0 0
      %676 = vmatpush1.bf16.msra.mxu0 0
      %677 = vmatprep.subr.bf16.mxu0 0
      %678 = vmatpush1.bf16.msra.mxu0 0
      %679 = vmatprep.subr.bf16.mxu0 0
      %680 = vmatpush1.bf16.msra.mxu0 0
      %681 = vmatprep.subr.bf16.mxu0 0
      %682 = vmatpush1.bf16.msra.mxu0 0
      %683 = vmatprep.subr.bf16.mxu0 0
      %684 = vmatpush1.bf16.msra.mxu0 0
      %685 = vmatprep.subr.bf16.mxu0 0
      %686 = vmatpush1.bf16.msra.mxu0 0
      %687 = vmatprep.subr.bf16.mxu0 0
      %688 = vmatpush1.bf16.msra.mxu0 0
      %689 = vmatprep.subr.bf16.mxu0 0
      %690 = vmatpush1.bf16.msra.mxu0 0
      %691 = vmatprep.subr.bf16.mxu0 0
      %692 = vmatpush1.bf16.msra.mxu0 0
      %693 = vmatprep.mubr.bf16.mxu0 0
      %694 = vmatmul.mubr.bf16.gmra.mrb[0].mxu0 %v650
      %v695 = vpop.f32.mrb[0].mxu0
      %v696 = vadd.f32 %v635, %v695
      %v697 = vpop.f32.mrb[0].mxu0
      %v698 = vpop.f32.mrb[0].mxu0
      %v699 = vadd.f32 %v635, %v698
      %v700 = vpop.f32.mrb[0].mxu0
      %701 = vmatprep.mubr.bf16.mxu0 0
      %702 = vmatmul.mubr.bf16.gmra.mrb[0].mxu0 %v653
      %v703 = vpop.f32.mrb[0].mxu0
      %v704 = vadd.f32 %v635, %v703
      %v705 = vpop.f32.mrb[0].mxu0
      %v706 = vpop.f32.mrb[0].mxu0
      %v707 = vadd.f32 %v635, %v706
      %v708 = vpop.f32.mrb[0].mxu0
      %709 = vmatprep.mubr.bf16.mxu0 0
      %710 = vmatmul.mubr.bf16.gmra.mrb[0].mxu0 %v656
      %v711 = vpop.f32.mrb[0].mxu0
      %v712 = vadd.f32 %v635, %v711
      %v713 = vpop.f32.mrb[0].mxu0
      %v714 = vpop.f32.mrb[0].mxu0
      %v715 = vadd.f32 %v635, %v714
      %v716 = vpop.f32.mrb[0].mxu0
      %717 = vmatprep.mubr.bf16.mxu0 0
      %718 = vmatmul.mubr.bf16.gmra.mrb[0].mxu0 %v659
      %v719 = vpop.f32.mrb[0].mxu0
      %v720 = vadd.f32 %v635, %v719
      %v721 = vpop.f32.mrb[0].mxu0
      %v722 = vpop.f32.mrb[0].mxu0
      %v723 = vadd.f32 %v635, %v722
      %v724 = vpop.f32.mrb[0].mxu0
      %725 = vdwg.mxu0
      %v726 = vtanh.pop %v696
      %v727 = vtanh.pop %v699
      %v728 = vtanh.pop %v704
      %v729 = vtanh.pop %v707
      %v730 = vtanh.pop %v712
      %v731 = vtanh.pop %v715
      %v732 = vtanh.pop %v720
      %v733 = vtanh.pop %v723
      %734 = vmatprep.subr.mxu0 0.0
      %735 = vmatpush1.msra.mxu0 %v726
      %736 = vmatprep.subr.mxu0 0.0
      %737 = vmatpush1.msra.mxu0 %v727
      %738 = vmatprep.subr.mxu0 0.0
      %739 = vmatpush1.msra.mxu0 %v728
      %740 = vmatprep.subr.mxu0 0.0
      %741 = vmatpush1.msra.mxu0 %v729
      %742 = vmatprep.subr.mxu0 0.0
      %743 = vmatpush1.msra.mxu0 %v730
      %744 = vmatprep.subr.mxu0 0.0
      %745 = vmatpush1.msra.mxu0 %v731
      %746 = vmatprep.subr.mxu0 0.0
      %747 = vmatpush1.msra.mxu0 %v732
      %748 = vmatprep.subr.mxu0 0.0
      %749 = vmatpush1.msra.mxu0 %v733
      %750 = vmatprep.subr.mxu0 0.0
      %751 = vmatpush1.msra.mxu0 0.0
      %752 = vmatprep.subr.mxu0 0.0
      %753 = vmatpush1.msra.mxu0 0.0
      %754 = vmatprep.subr.mxu0 0.0
      %755 = vmatpush1.msra.mxu0 0.0
      %756 = vmatprep.subr.mxu0 0.0
      %757 = vmatpush1.msra.mxu0 0.0
      %758 = vmatprep.subr.mxu0 0.0
      %759 = vmatpush1.msra.mxu0 0.0
      %760 = vmatprep.subr.mxu0 0.0
      %761 = vmatpush1.msra.mxu0 0.0
      %762 = vmatprep.subr.mxu0 0.0
      %763 = vmatpush1.msra.mxu0 0.0
      %764 = vmatprep.subr.mxu0 0.0
      %765 = vmatpush1.msra.mxu0 0.0
      %766 = vmatprep.subr.mxu0 0.0
      %767 = vmatpush1.msra.mxu0 0.0
      %768 = vmatprep.subr.mxu0 0.0
      %769 = vmatpush1.msra.mxu0 0.0
      %770 = vmatprep.subr.mxu0 0.0
      %771 = vmatpush1.msra.mxu0 0.0
      %772 = vmatprep.subr.mxu0 0.0
      %773 = vmatpush1.msra.mxu0 0.0
      %774 = vmatprep.subr.mxu0 0.0
      %775 = vmatpush1.msra.mxu0 0.0
      %776 = vmatprep.subr.mxu0 0.0
      %777 = vmatpush1.msra.mxu0 0.0
      %778 = vmatprep.subr.mxu0 0.0
      %779 = vmatpush1.msra.mxu0 0.0
      %780 = vmatprep.subr.mxu0 0.0
      %781 = vmatpush1.msra.mxu0 0.0
      %782 = vmatprep.subr.mxu0 0.0
      %783 = vmatpush1.msra.mxu0 0.0
      %784 = vmatprep.subr.mxu0 0.0
      %785 = vmatpush1.msra.mxu0 0.0
      %786 = vmatprep.subr.mxu0 0.0
      %787 = vmatpush1.msra.mxu0 0.0
      %788 = vmatprep.subr.mxu0 0.0
      %789 = vmatpush1.msra.mxu0 0.0
      %790 = vmatprep.subr.mxu0 0.0
      %791 = vmatpush1.msra.mxu0 0.0
      %792 = vmatprep.subr.mxu0 0.0
      %793 = vmatpush1.msra.mxu0 0.0
      %794 = vmatprep.subr.mxu0 0.0
      %795 = vmatpush1.msra.mxu0 0.0
      %796 = vmatprep.subr.mxu0 0.0
      %797 = vmatpush1.msra.mxu0 0.0
      %798 = vmatprep.mubr.f32.mxu0 0.0
      %799 = vmatmul.mubr.f32.gmra.mrb[0].mxu0 %v412
      %v800 = vpop.f32.mrb[0].mxu0
      %v801 = vadd.f32 0.0, %v800
      %v802 = vpop.f32.mrb[0].mxu0
      %803 = vmatprep.mubr.f32.mxu0 0.0
      %804 = vmatmul.mubr.f32.gmra.mrb[0].mxu0 %v415
      %v805 = vpop.f32.mrb[0].mxu0
      %v806 = vadd.f32 0.0, %v805
      %v807 = vpop.f32.mrb[0].mxu0
      %808 = vmatprep.mubr.f32.mxu0 0.0
      %809 = vmatmul.mubr.f32.gmra.mrb[0].mxu0 %v418
      %v810 = vpop.f32.mrb[0].mxu0
      %v811 = vadd.f32 0.0, %v810
      %v812 = vpop.f32.mrb[0].mxu0
      %813 = vmatprep.mubr.f32.mxu0 0.0
      %814 = vmatmul.mubr.f32.gmra.mrb[0].mxu0 %v421
      %v815 = vpop.f32.mrb[0].mxu0
      %v816 = vadd.f32 0.0, %v815
      %v817 = vpop.f32.mrb[0].mxu0
      %818 = vmatprep.mubr.f32.mxu0 0.0
      %819 = vmatmul.mubr.f32.gmra.mrb[0].mxu0 %v424
      %v820 = vpop.f32.mrb[0].mxu0
      %v821 = vadd.f32 0.0, %v820
      %v822 = vpop.f32.mrb[0].mxu0
      %823 = vmatprep.mubr.f32.mxu0 0.0
      %824 = vmatmul.mubr.f32.gmra.mrb[0].mxu0 %v427
      %v825 = vpop.f32.mrb[0].mxu0
      %v826 = vadd.f32 0.0, %v825
      %v827 = vpop.f32.mrb[0].mxu0
      %828 = vmatprep.mubr.f32.mxu0 0.0
      %829 = vmatmul.mubr.f32.gmra.mrb[0].mxu0 %v430
      %v830 = vpop.f32.mrb[0].mxu0
      %v831 = vadd.f32 0.0, %v830
      %v832 = vpop.f32.mrb[0].mxu0
      %833 = vmatprep.mubr.f32.mxu0 0.0
      %834 = vmatmul.mubr.f32.gmra.mrb[0].mxu0 %v433
      %v835 = vpop.f32.mrb[0].mxu0
      %v836 = vadd.f32 0.0, %v835
      %v837 = vpop.f32.mrb[0].mxu0
      %838 = vmatprep.mubr.f32.mxu0 0.0
      %839 = vmatmul.mubr.f32.gmra.mrb[0].mxu0 %v436
      %v840 = vpop.f32.mrb[0].mxu0
      %v841 = vadd.f32 0.0, %v840
      %v842 = vpop.f32.mrb[0].mxu0
      %843 = vmatprep.mubr.f32.mxu0 0.0
      %844 = vmatmul.mubr.f32.gmra.mrb[0].mxu0 %v439
      %v845 = vpop.f32.mrb[0].mxu0
      %v846 = vadd.f32 0.0, %v845
      %v847 = vpop.f32.mrb[0].mxu0
      %848 = vmatprep.mubr.f32.mxu0 0.0
      %849 = vmatmul.mubr.f32.gmra.mrb[0].mxu0 %v442
      %v850 = vpop.f32.mrb[0].mxu0
      %v851 = vadd.f32 0.0, %v850
      %v852 = vpop.f32.mrb[0].mxu0
      %853 = vmatprep.mubr.f32.mxu0 0.0
      %854 = vmatmul.mubr.f32.gmra.mrb[0].mxu0 %v445
      %v855 = vpop.f32.mrb[0].mxu0
      %v856 = vadd.f32 0.0, %v855
      %v857 = vpop.f32.mrb[0].mxu0
      %858 = vmatprep.mubr.f32.mxu0 0.0
      %859 = vmatmul.mubr.f32.gmra.mrb[0].mxu0 %v448
      %v860 = vpop.f32.mrb[0].mxu0
      %v861 = vadd.f32 0.0, %v860
      %v862 = vpop.f32.mrb[0].mxu0
      %863 = vmatprep.mubr.f32.mxu0 0.0
      %864 = vmatmul.mubr.f32.gmra.mrb[0].mxu0 %v451
      %v865 = vpop.f32.mrb[0].mxu0
      %v866 = vadd.f32 0.0, %v865
      %v867 = vpop.f32.mrb[0].mxu0
      %868 = vmatprep.mubr.f32.mxu0 0.0
      %869 = vmatmul.mubr.f32.gmra.mrb[0].mxu0 %v454
      %v870 = vpop.f32.mrb[0].mxu0
      %v871 = vadd.f32 0.0, %v870
      %v872 = vpop.f32.mrb[0].mxu0
      %873 = vmatprep.mubr.f32.mxu0 0.0
      %874 = vmatmul.mubr.f32.gmra.mrb[0].mxu0 %v457
      %v875 = vpop.f32.mrb[0].mxu0
      %v876 = vadd.f32 0.0, %v875
      %v877 = vpop.f32.mrb[0].mxu0
      %878 = vdwg.mxu0
      %879 = vst.msk [vmem:[%s266] sm:$0xff] %vm604, %v801
      %880 = vst.msk [vmem:[%s266 + $0x8] sm:$0xff] %vm604, %v806
      %881 = vst.msk [vmem:[%s266 + $0x10] sm:$0xff] %vm604, %v811
      %882 = vst.msk [vmem:[%s266 + $0x18] sm:$0xff] %vm604, %v816
      %883 = vst.msk [vmem:[%s266 + $0x20] sm:$0xff] %vm604, %v821
      %884 = vst.msk [vmem:[%s266 + $0x28] sm:$0xff] %vm604, %v826
      %885 = vst.msk [vmem:[%s266 + $0x30] sm:$0xff] %vm604, %v831
      %886 = vst.msk [vmem:[%s266 + $0x38] sm:$0xff] %vm604, %v836
      %887 = vst.msk [vmem:[%s266 + $0x40] sm:$0xff] %vm604, %v841
      %888 = vst.msk [vmem:[%s266 + $0x48] sm:$0xff] %vm604, %v846
      %889 = vst.msk [vmem:[%s266 + $0x50] sm:$0xff] %vm604, %v851
      %890 = vst.msk [vmem:[%s266 + $0x58] sm:$0xff] %vm604, %v856
      %891 = vst.msk [vmem:[%s266 + $0x60] sm:$0xff] %vm604, %v861
      %892 = vst.msk [vmem:[%s266 + $0x68] sm:$0xff] %vm604, %v866
      %893 = vst.msk [vmem:[%s266 + $0x70] sm:$0xff] %vm604, %v871
      %894 = vst.msk [vmem:[%s266 + $0x78] sm:$0xff] %vm604, %v876
      %p895 = scmp.lt.s32.totalorder %s18, 1
      %s896 = scalar_select %p895, %s18, 1
      %s897 = smul.addr %s896, 16
      %s898 = smul.addr %s897, 8
      %s899 = scalar_lea.vmem %s5, %s898
      %p900 = scmp.lt.s32.totalorder %s18, 1
      %s901 = scalar_select %p900, %s18, 1
      %s902 = smul.addr %s901, 16
      %s903 = smul.addr %s902, 8
      %s904 = scalar_lea.vmem %s6, %s903
      // Predicated region
      $region41: #{s3prl_wrapper_forward.1} parent=39 // pred_check
        %p905 = pneg %p146
      $region42: #{s3prl_wrapper_forward.1} parent=39 // pred_check_branch
        %907 = sbr.rel (%p905) target = $region44
      $region43: #{s3prl_wrapper_forward.1} parent=39 // pred_region
        _
      $region44: #{s3prl_wrapper_forward.1} parent=39 // pred_fallthru
        _
      // Predicated region
      $region45: #{s3prl_wrapper_forward.1} parent=39 // pred_check
        %p908 = pneg %p172
      $region46: #{s3prl_wrapper_forward.1} parent=39 // pred_check_branch
        %910 = sbr.rel (%p908) target = $region48
      $region47: #{s3prl_wrapper_forward.1} parent=39 // pred_region
        _
      $region48: #{s3prl_wrapper_forward.1} parent=39 // pred_fallthru
        _
    $region40: #{s3prl_wrapper_forward.1} parent=5 // pred_fallthru
      _
    %p911 = scmp.le.s32.totalorder 2, %s13
    // Predicated region
    $region49: #{s3prl_wrapper_forward.1} parent=5 // pred_check
      %p912 = pneg %p911
    $region50: #{s3prl_wrapper_forward.1} parent=5 // pred_check_branch
      %914 = sbr.rel (%p912) target = $region52
    $region51: #{s3prl_wrapper_forward.1} parent=5 // pred_region
      %s915 = ssub.s32 %s13, 2
      // Predicated region
      $region53: #{s3prl_wrapper_forward.1} parent=51 // pred_check
        %p916 = pneg %p152
      $region54: #{s3prl_wrapper_forward.1} parent=51 // pred_check_branch
        %918 = sbr.rel (%p916) target = $region56
      $region55: #{s3prl_wrapper_forward.1} parent=51 // pred_region
        %p919 = scmp.lt.s32.totalorder %s19, 1
        %s920 = scalar_select %p919, %s19, 1
        %s921 = smul.addr %s920, 16
        %s922 = smul.addr %s921, 8
        %s923 = scalar_lea.vmem %s5, %s922
      $region56: #{s3prl_wrapper_forward.1} parent=51 // pred_fallthru
        _
      // Predicated region
      $region57: #{s3prl_wrapper_forward.1} parent=51 // pred_check
        %p924 = pneg %p178
      $region58: #{s3prl_wrapper_forward.1} parent=51 // pred_check_branch
        %926 = sbr.rel (%p924) target = $region60
      $region59: #{s3prl_wrapper_forward.1} parent=51 // pred_region
        %p927 = scmp.lt.s32.totalorder %s19, 1
        %s928 = scalar_select %p927, %s19, 1
        %s929 = smul.addr %s928, 16
        %s930 = smul.addr %s929, 8
        %s931 = scalar_lea.vmem %s6, %s930
      $region60: #{s3prl_wrapper_forward.1} parent=51 // pred_fallthru
        _
    $region52: #{s3prl_wrapper_forward.1} parent=5 // pred_fallthru
      _
  $region6: #{s3prl_wrapper_forward.1} parent=0 // loop_footer
    %s17 = sadd.s32 1, %s13
  $region7: #{s3prl_wrapper_forward.1} parent=0 // loop_footer_branch
    %12 = sbr.rel target = $region3
  $region8: #{s3prl_wrapper_forward.1} parent=0 // loop_exit
    _

</llo_original>
